<compile_context>
chip_gen: v5e
topology: v5e:2x2
jax: 0.10.0
libtpu: 0.0.40
codegen_flags: <defaults>
</compile_context>

<pallas_src>
import functools

import numpy as np
import jax
import jax.numpy as jnp
from jax.experimental import pallas as pl
from jax.experimental.pallas import tpu as pltpu

_PACK_W = 128  # lane width of the packed-weights operand / padded logits


def _round_up(x, m):
    return (x + m - 1) // m * m


# ----------------------------------------------------------------------------
# Activations (applied inside the fused kernel)
# ----------------------------------------------------------------------------
def _activation(y, kind):
    if kind == "ReLU":
        return jnp.maximum(y, 0.0)
    if kind == "GELU":
        return jax.nn.gelu(y, approximate=False)
    if kind == "SiLU":
        return y * jax.nn.sigmoid(y)
    raise ValueError(f"unknown activation {kind}")


# ----------------------------------------------------------------------------
# Fully fused forward kernel: whole network in one invocation.
#   x_ref : (n*H, W*Cin)  lane-dense activations (rows = image*h, lanes = w*c)
#   w_ref : (R, 128)      packed weights/matrices, unpacked via static slices
#   o_ref : (n_pad, 128)  lane-dense padded logits
# ----------------------------------------------------------------------------
def _fused_cnn_kernel(x_ref, w_ref, o_ref, *, cfg):
    nrows, act = cfg["nrows"], cfg["act"]
    x = x_ref[...].astype(jnp.float32)

    for st in cfg["stages"]:
        k, p = st["k"], st["k"] // 2
        in_w, out_w = st["in_w"], st["out_w"]

        # Conv2d(k, padding=k//2): k row-shifted lane-dense matmuls against the
        # banded (Toeplitz-expanded) weights.  Row shifts + H zero padding +
        # image-boundary masking are all folded into 0/1 matrices S_sy; W zero
        # padding is folded into the band itself.
        acc = None
        for dy in range(k):
            sy = dy - p
            w0 = st["band_off"] + dy * st["band_stride"]
            wtap = w_ref[w0:w0 + in_w, :out_w]                       # (in_w, out_w)
            if sy == 0:
                xs = x
            else:
                s0 = st["srow_offs"][sy]
                srow = w_ref[s0:s0 + nrows, :nrows]                  # (nrows, nrows)
                xs = jnp.dot(srow, x, preferred_element_type=jnp.float32)
            term = jnp.dot(xs, wtap, preferred_element_type=jnp.float32)
            acc = term if acc is None else acc + term

        shift = w_ref[st["shift_off"]:st["shift_off"] + 1, :out_w]   # bias (+BN shift)
        y = _activation(acc + shift, act)

        # MaxPool2d(2): W pairs via a lane-shift matrix (valid values stay in
        # the even-w lane groups; odd groups become stale and are ignored by
        # every downstream weight), H pairs via a row-shift matrix (valid rows
        # stay at physical row multiples of the doubled row stride).
        pw_mat = w_ref[st["wpool_off"]:st["wpool_off"] + out_w, :out_w]
        y = jnp.maximum(y, jnp.dot(y, pw_mat, preferred_element_type=jnp.float32))
        ph_mat = w_ref[st["hpool_off"]:st["hpool_off"] + nrows, :nrows]
        y = jnp.maximum(y, jnp.dot(ph_mat, y, preferred_element_type=jnp.float32))
        x = y

    # Flatten -> Linear -> act -> [Dropout] -> Linear, fused in.  wd1 was
    # permuted / zero-padded at prep time to the kernel's strided NHWC layout;
    # per-h selection matrices pick each image's valid rows (no reshapes).
    hf, pw, dh, n_pad = cfg["hf"], cfg["pw"], cfg["dh"], cfg["n_pad"]
    h1 = None
    for i in range(hf):
        s0 = cfg["sel_off"] + i * cfg["sel_stride"]
        sel_i = w_ref[s0:s0 + n_pad, :nrows]                         # (n_pad, nrows)
        rows_i = jnp.dot(sel_i, x, preferred_element_type=jnp.float32)
        w0 = cfg["wd1_off"] + i * cfg["wd1_stride"]
        wd1_i = w_ref[w0:w0 + pw, :dh]
        term = jnp.dot(rows_i, wd1_i, preferred_element_type=jnp.float32)
        h1 = term if h1 is None else h1 + term
    h1 = _activation(h1 + w_ref[cfg["bd1_off"]:cfg["bd1_off"] + 1, :dh], act)

    # TODO(synk): nn.Dropout(p) is identity at inference; training-mode dropout
    # (random masking) is not implemented.
    wd2 = w_ref[cfg["wd2_off"]:cfg["wd2_off"] + dh, :]               # (dh, 128) padded
    bd2 = w_ref[cfg["bd2_off"]:cfg["bd2_off"] + 1, :]
    logits = jnp.dot(h1, wd2, preferred_element_type=jnp.float32) + bd2
    o_ref[...] = logits.astype(o_ref.dtype)                         # unmasked (8,128) store


# ----------------------------------------------------------------------------
# One-time (numpy, host-side) weight plumbing -- hoisted out of the jit.
# ----------------------------------------------------------------------------
def _fold_batchnorm(w, b, is_batchnorm, bn_eps, gamma=None, beta=None,
                    mean=None, var=None):
    """Fold conv bias + eval-mode BatchNorm2d into (scaled weights, shift)."""
    cout = w.shape[-1]
    if not is_batchnorm:
        return w, b
    # TODO(synk): training-mode batch statistics are not implemented; running
    # stats / affine params default to fresh-init values when not provided.
    gamma = np.ones((cout,), np.float32) if gamma is None else np.asarray(gamma, np.float32)
    beta = np.zeros((cout,), np.float32) if beta is None else np.asarray(beta, np.float32)
    mean = np.zeros((cout,), np.float32) if mean is None else np.asarray(mean, np.float32)
    var = np.ones((cout,), np.float32) if var is None else np.asarray(var, np.float32)
    scale = gamma / np.sqrt(var + bn_eps)
    return w * scale, beta + (b - mean) * scale


def _banded_conv_weight(w, w_log, stride_in):
    """Expand (k,k,Cin,Cout) conv weights into k banded matrices so the conv of
    one image row is  out_row = in_row @ wb[dy], input lanes (w, c) strided by
    `stride_in`, output lanes (w, cout) dense.  W zero padding is in the band;
    stale (un-compacted pooled) input lane groups get zero weight rows."""
    k, _, cin, cout = w.shape
    p = k // 2
    wb = np.zeros((k, w_log * stride_in, w_log * cout), np.float32)
    for dx in range(k):
        for wo in range(w_log):
            wx = wo + dx - p
            if 0 <= wx < w_log:
                wb[:, wx * stride_in:wx * stride_in + cin,
                   wo * cout:(wo + 1) * cout] = w[:, dx]
    return wb


def _permute_dense1(w1, hf, wf, cf, stride_f):
    """Re-lay nn.Linear weights (rows in NCHW-Flatten = CHW order) onto the
    kernel's strided NHWC activation layout (hf blocks of lanes w*stride+c)."""
    dh = w1.shape[-1]
    w = w1.reshape(cf, hf, wf, dh).transpose(1, 2, 0, 3)            # (hf, wf, cf, dh)
    w = np.pad(w, ((0, 0), (0, 0), (0, stride_f - cf), (0, 0)))     # zeros for stale groups
    return w.reshape(hf, wf * stride_f, dh)


def _row_shift_matrix(n, hh, shift):
    """S with S[r, r+shift] = 1 iff both rows lie in the same image, so
    (S @ x)[r] = x[r+shift] with zero fill outside the image (H padding)."""
    nrows = n * hh
    s = np.zeros((nrows, nrows), np.float32)
    for r in range(nrows):
        if 0 <= (r % hh) + shift < hh:
            s[r, r + shift] = 1.0
    return s


def _lane_shift_matrix(out_w, cout):
    """P with P[l+cout, l] = 1, so (y @ P)[:, l] = y[:, l+cout] (zero fill)."""
    p = np.zeros((out_w, out_w), np.float32)
    for l in range(out_w - cout):
        p[l + cout, l] = 1.0
    return p


def prepare_params(conv_params, dense_params, *, batch, in_channels=3,
                   spatial=16, activation="ReLU", is_batchnorm=True,
                   bn_eps=1e-5, dropout=0.0):
    """Build the single packed (rows, 128) weight operand + static kernel cfg.
    Called once, outside the jitted forward (no per-call XLA plumbing ops)."""
    del dropout  # TODO(synk): dropout is identity at inference.
    hh = ww = spatial
    n = batch
    n_pad = _round_up(max(n, 8), 8)
    nrows = n * hh
    assert nrows <= _PACK_W, "row-shift/selection matrices assume batch*H <= 128"

    sections, cursor = [], [0]

    def add(arr):
        arr = np.asarray(arr, np.float32)
        assert arr.ndim == 2 and arr.shape[1] <= _PACK_W
        rp = _round_up(arr.shape[0], 8)
        blk = np.zeros((rp, _PACK_W), np.float32)
        blk[:arr.shape[0], :arr.shape[1]] = arr
        off = cursor[0]
        sections.append(blk)
        cursor[0] += rp
        return off

    stages = []
    h_log, w_log, stride, c_cur, rs = hh, ww, in_channels, in_channels, 1
    for prm in conv_params:
        w = np.asarray(prm["w"], np.float32)
        b = np.asarray(prm["b"], np.float32)
        k, cout = w.shape[0], w.shape[-1]
        assert k % 2 == 1 and h_log % 2 == 0 and w_log % 2 == 0
        w_eff, shift = _fold_batchnorm(w, b, is_batchnorm, bn_eps,
                                       prm.get("gamma"), prm.get("beta"),
                                       prm.get("mean"), prm.get("var"))
        in_w, out_w = w_log * stride, w_log * cout
        assert in_w <= _PACK_W and out_w <= _PACK_W  # TODO(synk): tile W via grid if this breaks
        band = _banded_conv_weight(w_eff, w_log, stride)
        in_w_pad = _round_up(in_w, 8)
        band_off = None
        for dy in range(k):
            off = add(band[dy])
            band_off = off if band_off is None else band_off
        shift_off = add(np.tile(shift, w_log).reshape(1, out_w))
        p = k // 2
        srow_offs = {sy: add(_row_shift_matrix(n, hh, sy * rs))
                     for sy in range(-p, p + 1) if sy != 0}
        hpool_off = add(_row_shift_matrix(n, hh, rs))
        wpool_off = add(_lane_shift_matrix(out_w, cout))
        stages.append(dict(k=k, in_w=in_w, out_w=out_w,
                           band_off=band_off, band_stride=in_w_pad,
                           shift_off=shift_off, srow_offs=srow_offs,
                           hpool_off=hpool_off, wpool_off=wpool_off))
        # After conv + 2x2 pool: H/W stay physically un-compacted; valid data
        # sits at doubled row/lane strides for the next stage to read.
        h_log //= 2
        w_log //= 2
        stride = 2 * cout
        c_cur = cout
        rs *= 2

    hf, wf, cf, rs_final = h_log, w_log, c_cur, rs
    w1, b1, w2, b2 = [np.asarray(a, np.float32) for a in dense_params]
    dh, nc = w1.shape[-1], w2.shape[-1]
    assert dh <= _PACK_W and nc <= _PACK_W
    pw = wf * stride                         # lane count of the final activation
    wd1 = _permute_dense1(w1, hf, wf, cf, stride)                    # (hf, pw, dh)
    pw_pad = _round_up(pw, 8)
    wd1_off = None
    for i in range(hf):
        off = add(wd1[i])
        wd1_off = off if wd1_off is None else wd1_off
    bd1_off = add(b1.reshape(1, dh))
    wd2_p = np.zeros((dh, _PACK_W), np.float32)
    wd2_p[:, :nc] = w2                       # classes zero-padded to 128 lanes
    wd2_off = add(wd2_p)
    bd2_p = np.zeros((1, _PACK_W), np.float32)
    bd2_p[0, :nc] = b2
    bd2_off = add(bd2_p)
    sel_off = None
    for i in range(hf):                      # per-h row-selection matrices
        s = np.zeros((n_pad, nrows), np.float32)
        for b_ in range(n):
            s[b_, b_ * hh + i * rs_final] = 1.0
        off = add(s)
        sel_off = off if sel_off is None else sel_off

    packed = jnp.asarray(np.concatenate(sections, axis=0))
    cfg = dict(act=activation, n=n, n_pad=n_pad, hh=hh, ww=ww, cin=in_channels,
               nrows=nrows, nc=nc, dh=dh, hf=hf, pw=pw,
               stages=stages, wd1_off=wd1_off, wd1_stride=pw_pad,
               bd1_off=bd1_off, wd2_off=wd2_off, bd2_off=bd2_off,
               sel_off=sel_off, sel_stride=n_pad)
    return packed, cfg


# ----------------------------------------------------------------------------
# Forward wrapper: one pallas_call, whole batch in one invocation (no grid).
# ----------------------------------------------------------------------------
def make_forward(cfg):
    kernel = functools.partial(_fused_cnn_kernel, cfg=cfg)
    n, hh, ww, cin = cfg["n"], cfg["hh"], cfg["ww"], cfg["cin"]

    @jax.jit
    def forward(x_nchw, packed):
        # PyTorch NCHW -> lane-dense rows (image*h, w*c); single tiny XLA op.
        x = jnp.transpose(x_nchw, (0, 2, 3, 1)).reshape(n * hh, ww * cin)
        x = x.astype(jnp.float32)
        out = pl.pallas_call(
            kernel,
            out_shape=jax.ShapeDtypeStruct((cfg["n_pad"], _PACK_W), jnp.float32),
            in_specs=[pl.BlockSpec(memory_space=pltpu.MemorySpace.VMEM),
                      pl.BlockSpec(memory_space=pltpu.MemorySpace.VMEM)],
            out_specs=pl.BlockSpec(memory_space=pltpu.MemorySpace.VMEM),
        )(x, packed)
        return out[:n, :cfg["nc"]]

    return forward


# ----------------------------------------------------------------------------
# Pure-JAX reference (for validation only)
# ----------------------------------------------------------------------------
def _reference_forward(x_nchw, conv_params, dense_params, *, activation,
                       is_batchnorm, bn_eps=1e-5):
    act = {"ReLU": jax.nn.relu,
           "GELU": lambda v: jax.nn.gelu(v, approximate=False),
           "SiLU": jax.nn.silu}[activation]
    x = jnp.asarray(x_nchw, jnp.float32)
    for prm in conv_params:
        w, b = jnp.asarray(prm["w"]), jnp.asarray(prm["b"])
        k = w.shape[0]
        w_oihw = jnp.transpose(w, (3, 2, 0, 1))
        x = jax.lax.conv_general_dilated(
            x, w_oihw, window_strides=(1, 1),
            padding=[(k // 2, k // 2), (k // 2, k // 2)],
            dimension_numbers=("NCHW", "OIHW", "NCHW"))
        x = x + b.reshape(1, -1, 1, 1)
        if is_batchnorm:  # eval-mode BN with fresh-init running stats
            x = x / jnp.sqrt(1.0 + bn_eps)
        x = act(x)
        x = jax.lax.reduce_window(x, -jnp.inf, jax.lax.max,
                                  (1, 1, 2, 2), (1, 1, 2, 2), "VALID")
    w1, b1, w2, b2 = dense_params
    feat = x.reshape(x.shape[0], -1)
    h = act(feat @ w1 + b1)
    return h @ w2 + b2


# ----------------------------------------------------------------------------
# Parameter init (deterministic, synthetic)
# ----------------------------------------------------------------------------
def init_params(key, num_filters, filter_sizes, n_neurons_dense, num_classes,
                in_channels=3, spatial=16):
    keys = jax.random.split(key, 2 * len(num_filters) + 4)
    ki = 0
    conv_params = []
    c, h = in_channels, spatial
    for nf, fs in zip(num_filters, filter_sizes):
        fan_in = fs * fs * c
        w = jax.random.normal(keys[ki], (fs, fs, c, nf), jnp.float32) * (fan_in ** -0.5)
        b = jax.random.normal(keys[ki + 1], (nf,), jnp.float32) * 0.01
        ki += 2
        conv_params.append({"w": w, "b": b})
        c, h = nf, h // 2
    flat = c * h * h              # == NCHW Flatten() size (C, H, W order)
    w1 = jax.random.normal(keys[ki], (flat, n_neurons_dense), jnp.float32) * (flat ** -0.5)
    b1 = jax.random.normal(keys[ki + 1], (n_neurons_dense,), jnp.float32) * 0.01
    w2 = jax.random.normal(keys[ki + 2], (n_neurons_dense, num_classes),
                           jnp.float32) * (n_neurons_dense ** -0.5)
    b2 = jax.random.normal(keys[ki + 3], (num_classes,), jnp.float32) * 0.01
    return conv_params, (w1, b1, w2, b2)


if __name__ == "__main__":
    # Configuration consistent with the module's __init__:
    #   num_filters=[4, 8], filter_sizes=[3, 3], activation='ReLU',
    #   n_neurons_denseLayer=32, num_classes=10, isBatchNormalization=True,
    #   dropout=0.3 (identity at inference), inChannels=3 (hard-coded in module)
    num_filters = [4, 8]
    filter_sizes = [3, 3]
    n_neurons_dense = 32
    num_classes = 10
    batch, in_ch, spatial = 2, 3, 16

    key = jax.random.PRNGKey(0)
    k_x, k_p = jax.random.split(key)
    x = jax.random.normal(k_x, (batch, in_ch, spatial, spatial), jnp.float32)

    conv_params, dense_params = init_params(
        k_p, num_filters, filter_sizes, n_neurons_dense, num_classes,
        in_channels=in_ch, spatial=spatial)

    # One-time host-side weight preparation (outside the jitted forward).
    packed, cfg = prepare_params(conv_params, dense_params, batch=batch,
                                 in_channels=in_ch, spatial=spatial,
                                 activation="ReLU", is_batchnorm=True,
                                 dropout=0.3)
    forward = make_forward(cfg)

    out = jax.block_until_ready(forward(x, packed))
    assert out.shape == (batch, num_classes), out.shape

    ref = jax.block_until_ready(
        _reference_forward(x, conv_params, dense_params, activation="ReLU",
                           is_batchnorm=True))
    np.testing.assert_allclose(np.asarray(out), np.asarray(ref),
                               rtol=2e-3, atol=2e-3)
    print("KERNEL_OK")
</pallas_src>

<mosaic_0001>
module attributes {stable_mosaic.version = 11 : i64} {
  func.func @_fused_cnn_kernel(%arg0: memref<32x48xf32, #tpu.memory_space<vmem>>, %arg1: memref<1008x128xf32, #tpu.memory_space<vmem>>, %arg2: memref<8x128xf32, #tpu.memory_space<vmem>>) attributes {dimension_semantics = [], scalar_prefetch = 0 : i64, scratch_operands = 0 : i64, tpu.core_type = #tpu.core_type<tc>} {
    %c0 = arith.constant 0 : index
    %c0_0 = arith.constant 0 : index
    %0 = vector.load %arg0[%c0, %c0_0] : memref<32x48xf32, #tpu.memory_space<vmem>>, vector<32x48xf32>
    %c0_1 = arith.constant 0 : index
    %c0_2 = arith.constant 0 : index
    %1 = vector.load %arg1[%c0_1, %c0_2] : memref<1008x128xf32, #tpu.memory_space<vmem>>, vector<48x64xf32>
    %c152 = arith.constant 152 : index
    %c0_3 = arith.constant 0 : index
    %2 = vector.load %arg1[%c152, %c0_3] : memref<1008x128xf32, #tpu.memory_space<vmem>>, vector<32x32xf32>
    %cst = arith.constant dense<0.000000e+00> : vector<32x48xf32>
    %3 = tpu.matmul %2, %0, %cst {dimension_numbers = #tpu.dot_dimension_numbers<[1], [0], [0], [1], [0, 0, 1, 1], [], []>} : vector<32x32xf32>, vector<32x48xf32>, vector<32x48xf32> -> vector<32x48xf32>
    %cst_4 = arith.constant dense<0.000000e+00> : vector<32x64xf32>
    %4 = tpu.matmul %3, %1, %cst_4 {dimension_numbers = #tpu.dot_dimension_numbers<[1], [0], [0], [1], [0, 0, 1, 1], [], []>} : vector<32x48xf32>, vector<48x64xf32>, vector<32x64xf32> -> vector<32x64xf32>
    %c48 = arith.constant 48 : index
    %c0_5 = arith.constant 0 : index
    %5 = vector.load %arg1[%c48, %c0_5] : memref<1008x128xf32, #tpu.memory_space<vmem>>, vector<48x64xf32>
    %cst_6 = arith.constant dense<0.000000e+00> : vector<32x64xf32>
    %6 = tpu.matmul %0, %5, %cst_6 {dimension_numbers = #tpu.dot_dimension_numbers<[1], [0], [0], [1], [0, 0, 1, 1], [], []>} : vector<32x48xf32>, vector<48x64xf32>, vector<32x64xf32> -> vector<32x64xf32>
    %7 = arith.addf %4, %6 : vector<32x64xf32>
    %c96 = arith.constant 96 : index
    %c0_7 = arith.constant 0 : index
    %8 = vector.load %arg1[%c96, %c0_7] : memref<1008x128xf32, #tpu.memory_space<vmem>>, vector<48x64xf32>
    %c184 = arith.constant 184 : index
    %c0_8 = arith.constant 0 : index
    %9 = vector.load %arg1[%c184, %c0_8] : memref<1008x128xf32, #tpu.memory_space<vmem>>, vector<32x32xf32>
    %cst_9 = arith.constant dense<0.000000e+00> : vector<32x48xf32>
    %10 = tpu.matmul %9, %0, %cst_9 {dimension_numbers = #tpu.dot_dimension_numbers<[1], [0], [0], [1], [0, 0, 1, 1], [], []>} : vector<32x32xf32>, vector<32x48xf32>, vector<32x48xf32> -> vector<32x48xf32>
    %cst_10 = arith.constant dense<0.000000e+00> : vector<32x64xf32>
    %11 = tpu.matmul %10, %8, %cst_10 {dimension_numbers = #tpu.dot_dimension_numbers<[1], [0], [0], [1], [0, 0, 1, 1], [], []>} : vector<32x48xf32>, vector<48x64xf32>, vector<32x64xf32> -> vector<32x64xf32>
    %12 = arith.addf %7, %11 : vector<32x64xf32>
    %c144 = arith.constant 144 : index
    %c0_11 = arith.constant 0 : index
    %13 = vector.load %arg1[%c144, %c0_11] : memref<1008x128xf32, #tpu.memory_space<vmem>>, vector<1x64xf32>
    %14 = vector.broadcast %13 : vector<1x64xf32> to vector<32x64xf32>
    %15 = arith.addf %12, %14 : vector<32x64xf32>
    %cst_12 = arith.constant 0.000000e+00 : f32
    %16 = vector.broadcast %cst_12 : f32 to vector<32x64xf32>
    %17 = arith.maximumf %15, %16 : vector<32x64xf32>
    %c248 = arith.constant 248 : index
    %c0_13 = arith.constant 0 : index
    %18 = vector.load %arg1[%c248, %c0_13] : memref<1008x128xf32, #tpu.memory_space<vmem>>, vector<64x64xf32>
    %cst_14 = arith.constant dense<0.000000e+00> : vector<32x64xf32>
    %19 = tpu.matmul %17, %18, %cst_14 {dimension_numbers = #tpu.dot_dimension_numbers<[1], [0], [0], [1], [0, 0, 1, 1], [], []>} : vector<32x64xf32>, vector<64x64xf32>, vector<32x64xf32> -> vector<32x64xf32>
    %20 = arith.maximumf %17, %19 : vector<32x64xf32>
    %c216 = arith.constant 216 : index
    %c0_15 = arith.constant 0 : index
    %21 = vector.load %arg1[%c216, %c0_15] : memref<1008x128xf32, #tpu.memory_space<vmem>>, vector<32x32xf32>
    %cst_16 = arith.constant dense<0.000000e+00> : vector<32x64xf32>
    %22 = tpu.matmul %21, %20, %cst_16 {dimension_numbers = #tpu.dot_dimension_numbers<[1], [0], [0], [1], [0, 0, 1, 1], [], []>} : vector<32x32xf32>, vector<32x64xf32>, vector<32x64xf32> -> vector<32x64xf32>
    %23 = arith.maximumf %20, %22 : vector<32x64xf32>
    %c312 = arith.constant 312 : index
    %c0_17 = arith.constant 0 : index
    %24 = vector.load %arg1[%c312, %c0_17] : memref<1008x128xf32, #tpu.memory_space<vmem>>, vector<64x64xf32>
    %c512 = arith.constant 512 : index
    %c0_18 = arith.constant 0 : index
    %25 = vector.load %arg1[%c512, %c0_18] : memref<1008x128xf32, #tpu.memory_space<vmem>>, vector<32x32xf32>
    %cst_19 = arith.constant dense<0.000000e+00> : vector<32x64xf32>
    %26 = tpu.matmul %25, %23, %cst_19 {dimension_numbers = #tpu.dot_dimension_numbers<[1], [0], [0], [1], [0, 0, 1, 1], [], []>} : vector<32x32xf32>, vector<32x64xf32>, vector<32x64xf32> -> vector<32x64xf32>
    %cst_20 = arith.constant dense<0.000000e+00> : vector<32x64xf32>
    %27 = tpu.matmul %26, %24, %cst_20 {dimension_numbers = #tpu.dot_dimension_numbers<[1], [0], [0], [1], [0, 0, 1, 1], [], []>} : vector<32x64xf32>, vector<64x64xf32>, vector<32x64xf32> -> vector<32x64xf32>
    %c376 = arith.constant 376 : index
    %c0_21 = arith.constant 0 : index
    %28 = vector.load %arg1[%c376, %c0_21] : memref<1008x128xf32, #tpu.memory_space<vmem>>, vector<64x64xf32>
    %cst_22 = arith.constant dense<0.000000e+00> : vector<32x64xf32>
    %29 = tpu.matmul %23, %28, %cst_22 {dimension_numbers = #tpu.dot_dimension_numbers<[1], [0], [0], [1], [0, 0, 1, 1], [], []>} : vector<32x64xf32>, vector<64x64xf32>, vector<32x64xf32> -> vector<32x64xf32>
    %30 = arith.addf %27, %29 : vector<32x64xf32>
    %c440 = arith.constant 440 : index
    %c0_23 = arith.constant 0 : index
    %31 = vector.load %arg1[%c440, %c0_23] : memref<1008x128xf32, #tpu.memory_space<vmem>>, vector<64x64xf32>
    %c544 = arith.constant 544 : index
    %c0_24 = arith.constant 0 : index
    %32 = vector.load %arg1[%c544, %c0_24] : memref<1008x128xf32, #tpu.memory_space<vmem>>, vector<32x32xf32>
    %cst_25 = arith.constant dense<0.000000e+00> : vector<32x64xf32>
    %33 = tpu.matmul %32, %23, %cst_25 {dimension_numbers = #tpu.dot_dimension_numbers<[1], [0], [0], [1], [0, 0, 1, 1], [], []>} : vector<32x32xf32>, vector<32x64xf32>, vector<32x64xf32> -> vector<32x64xf32>
    %cst_26 = arith.constant dense<0.000000e+00> : vector<32x64xf32>
    %34 = tpu.matmul %33, %31, %cst_26 {dimension_numbers = #tpu.dot_dimension_numbers<[1], [0], [0], [1], [0, 0, 1, 1], [], []>} : vector<32x64xf32>, vector<64x64xf32>, vector<32x64xf32> -> vector<32x64xf32>
    %35 = arith.addf %30, %34 : vector<32x64xf32>
    %c504 = arith.constant 504 : index
    %c0_27 = arith.constant 0 : index
    %36 = vector.load %arg1[%c504, %c0_27] : memref<1008x128xf32, #tpu.memory_space<vmem>>, vector<1x64xf32>
    %37 = vector.broadcast %36 : vector<1x64xf32> to vector<32x64xf32>
    %38 = arith.addf %35, %37 : vector<32x64xf32>
    %cst_28 = arith.constant 0.000000e+00 : f32
    %39 = vector.broadcast %cst_28 : f32 to vector<32x64xf32>
    %40 = arith.maximumf %38, %39 : vector<32x64xf32>
    %c608 = arith.constant 608 : index
    %c0_29 = arith.constant 0 : index
    %41 = vector.load %arg1[%c608, %c0_29] : memref<1008x128xf32, #tpu.memory_space<vmem>>, vector<64x64xf32>
    %cst_30 = arith.constant dense<0.000000e+00> : vector<32x64xf32>
    %42 = tpu.matmul %40, %41, %cst_30 {dimension_numbers = #tpu.dot_dimension_numbers<[1], [0], [0], [1], [0, 0, 1, 1], [], []>} : vector<32x64xf32>, vector<64x64xf32>, vector<32x64xf32> -> vector<32x64xf32>
    %43 = arith.maximumf %40, %42 : vector<32x64xf32>
    %c576 = arith.constant 576 : index
    %c0_31 = arith.constant 0 : index
    %44 = vector.load %arg1[%c576, %c0_31] : memref<1008x128xf32, #tpu.memory_space<vmem>>, vector<32x32xf32>
    %cst_32 = arith.constant dense<0.000000e+00> : vector<32x64xf32>
    %45 = tpu.matmul %44, %43, %cst_32 {dimension_numbers = #tpu.dot_dimension_numbers<[1], [0], [0], [1], [0, 0, 1, 1], [], []>} : vector<32x32xf32>, vector<32x64xf32>, vector<32x64xf32> -> vector<32x64xf32>
    %46 = arith.maximumf %43, %45 : vector<32x64xf32>
    %c976 = arith.constant 976 : index
    %c0_33 = arith.constant 0 : index
    %47 = vector.load %arg1[%c976, %c0_33] : memref<1008x128xf32, #tpu.memory_space<vmem>>, vector<8x32xf32>
    %cst_34 = arith.constant dense<0.000000e+00> : vector<8x64xf32>
    %48 = tpu.matmul %47, %46, %cst_34 {dimension_numbers = #tpu.dot_dimension_numbers<[1], [0], [0], [1], [0, 0, 1, 1], [], []>} : vector<8x32xf32>, vector<32x64xf32>, vector<8x64xf32> -> vector<8x64xf32>
    %c672 = arith.constant 672 : index
    %c0_35 = arith.constant 0 : index
    %49 = vector.load %arg1[%c672, %c0_35] : memref<1008x128xf32, #tpu.memory_space<vmem>>, vector<64x32xf32>
    %cst_36 = arith.constant dense<0.000000e+00> : vector<8x32xf32>
    %50 = tpu.matmul %48, %49, %cst_36 {dimension_numbers = #tpu.dot_dimension_numbers<[1], [0], [0], [1], [0, 0, 1, 1], [], []>} : vector<8x64xf32>, vector<64x32xf32>, vector<8x32xf32> -> vector<8x32xf32>
    %c984 = arith.constant 984 : index
    %c0_37 = arith.constant 0 : index
    %51 = vector.load %arg1[%c984, %c0_37] : memref<1008x128xf32, #tpu.memory_space<vmem>>, vector<8x32xf32>
    %cst_38 = arith.constant dense<0.000000e+00> : vector<8x64xf32>
    %52 = tpu.matmul %51, %46, %cst_38 {dimension_numbers = #tpu.dot_dimension_numbers<[1], [0], [0], [1], [0, 0, 1, 1], [], []>} : vector<8x32xf32>, vector<32x64xf32>, vector<8x64xf32> -> vector<8x64xf32>
    %c736 = arith.constant 736 : index
    %c0_39 = arith.constant 0 : index
    %53 = vector.load %arg1[%c736, %c0_39] : memref<1008x128xf32, #tpu.memory_space<vmem>>, vector<64x32xf32>
    %cst_40 = arith.constant dense<0.000000e+00> : vector<8x32xf32>
    %54 = tpu.matmul %52, %53, %cst_40 {dimension_numbers = #tpu.dot_dimension_numbers<[1], [0], [0], [1], [0, 0, 1, 1], [], []>} : vector<8x64xf32>, vector<64x32xf32>, vector<8x32xf32> -> vector<8x32xf32>
    %55 = arith.addf %50, %54 : vector<8x32xf32>
    %c992 = arith.constant 992 : index
    %c0_41 = arith.constant 0 : index
    %56 = vector.load %arg1[%c992, %c0_41] : memref<1008x128xf32, #tpu.memory_space<vmem>>, vector<8x32xf32>
    %cst_42 = arith.constant dense<0.000000e+00> : vector<8x64xf32>
    %57 = tpu.matmul %56, %46, %cst_42 {dimension_numbers = #tpu.dot_dimension_numbers<[1], [0], [0], [1], [0, 0, 1, 1], [], []>} : vector<8x32xf32>, vector<32x64xf32>, vector<8x64xf32> -> vector<8x64xf32>
    %c800 = arith.constant 800 : index
    %c0_43 = arith.constant 0 : index
    %58 = vector.load %arg1[%c800, %c0_43] : memref<1008x128xf32, #tpu.memory_space<vmem>>, vector<64x32xf32>
    %cst_44 = arith.constant dense<0.000000e+00> : vector<8x32xf32>
    %59 = tpu.matmul %57, %58, %cst_44 {dimension_numbers = #tpu.dot_dimension_numbers<[1], [0], [0], [1], [0, 0, 1, 1], [], []>} : vector<8x64xf32>, vector<64x32xf32>, vector<8x32xf32> -> vector<8x32xf32>
    %60 = arith.addf %55, %59 : vector<8x32xf32>
    %c1000 = arith.constant 1000 : index
    %c0_45 = arith.constant 0 : index
    %61 = vector.load %arg1[%c1000, %c0_45] : memref<1008x128xf32, #tpu.memory_space<vmem>>, vector<8x32xf32>
    %cst_46 = arith.constant dense<0.000000e+00> : vector<8x64xf32>
    %62 = tpu.matmul %61, %46, %cst_46 {dimension_numbers = #tpu.dot_dimension_numbers<[1], [0], [0], [1], [0, 0, 1, 1], [], []>} : vector<8x32xf32>, vector<32x64xf32>, vector<8x64xf32> -> vector<8x64xf32>
    %c864 = arith.constant 864 : index
    %c0_47 = arith.constant 0 : index
    %63 = vector.load %arg1[%c864, %c0_47] : memref<1008x128xf32, #tpu.memory_space<vmem>>, vector<64x32xf32>
    %cst_48 = arith.constant dense<0.000000e+00> : vector<8x32xf32>
    %64 = tpu.matmul %62, %63, %cst_48 {dimension_numbers = #tpu.dot_dimension_numbers<[1], [0], [0], [1], [0, 0, 1, 1], [], []>} : vector<8x64xf32>, vector<64x32xf32>, vector<8x32xf32> -> vector<8x32xf32>
    %65 = arith.addf %60, %64 : vector<8x32xf32>
    %c928 = arith.constant 928 : index
    %c0_49 = arith.constant 0 : index
    %66 = vector.load %arg1[%c928, %c0_49] : memref<1008x128xf32, #tpu.memory_space<vmem>>, vector<1x32xf32>
    %67 = vector.broadcast %66 : vector<1x32xf32> to vector<8x32xf32>
    %68 = arith.addf %65, %67 : vector<8x32xf32>
    %cst_50 = arith.constant 0.000000e+00 : f32
    %69 = vector.broadcast %cst_50 : f32 to vector<8x32xf32>
    %70 = arith.maximumf %68, %69 : vector<8x32xf32>
    %c936 = arith.constant 936 : index
    %c0_51 = arith.constant 0 : index
    %71 = vector.load %arg1[%c936, %c0_51] : memref<1008x128xf32, #tpu.memory_space<vmem>>, vector<32x128xf32>
    %c968 = arith.constant 968 : index
    %c0_52 = arith.constant 0 : index
    %72 = vector.load %arg1[%c968, %c0_52] : memref<1008x128xf32, #tpu.memory_space<vmem>>, vector<1x128xf32>
    %cst_53 = arith.constant dense<0.000000e+00> : vector<8x128xf32>
    %73 = tpu.matmul %70, %71, %cst_53 {dimension_numbers = #tpu.dot_dimension_numbers<[1], [0], [0], [1], [0, 0, 1, 1], [], []>} : vector<8x32xf32>, vector<32x128xf32>, vector<8x128xf32> -> vector<8x128xf32>
    %74 = vector.broadcast %72 : vector<1x128xf32> to vector<8x128xf32>
    %75 = arith.addf %73, %74 : vector<8x128xf32>
    %c0_54 = arith.constant 0 : index
    %c0_55 = arith.constant 0 : index
    %76 = vector.load %arg2[%c0_54, %c0_55] : memref<8x128xf32, #tpu.memory_space<vmem>>, vector<8x128xf32>
    tpu.vector_store %arg2[%c0_54, %c0_55], %75 {strides = array<i32>} : memref<8x128xf32, #tpu.memory_space<vmem>>, vector<8x128xf32>,
    return
  }
}

</mosaic_0001>

<llo_original>
// kernel: forward.1
$region0: #{forward.1}
  #allocation0 [shape = 'u32[]', space=smem, size = 0x4, offset = 0x4, fixed_abs, tag = 'smem constant byte address 0x4 - core index']
  #allocation1 [shape = 'u32[72,128]{1,0:T(1,128)}', space=vmem, size = 0x9000, scoped, tag = 'internal scratch']
  %s0 = inlined_call_operand.vmem [shape: f32[32,48], index: 0, kind: input, shape index: {}]
  %s1 = inlined_call_operand.hbm [shape: f32[1008,128], index: 1, kind: input, shape index: {}]
  %s2 = inlined_call_operand.vmem [shape: f32[8,128], index: 2, kind: output, shape index: {}]
  %s3 = sld [smem:[#allocation0]]
  $region22: #{forward.1} parent=0
    _
  %s5 = ssub.s32 1, %s3
  %s6 = scalar_select 0, %s5, %s3
  $region1: #{forward.1} parent=0
    #allocation2 [shape = 'u8[516096]{0}', space=vmem, size = 0x7e000, scoped, tag = 'input window, operand 1, single buffered']
    #allocation3 [shape = 's32[1]{0}', space=sflag, size = 0x4, scoped, tag = 'scoped memory for forward.1']
    %7 = vsyncpa [#allocation3], 0
    // Predicated region
    $region2: #{forward.1} parent=1 // pred_check
      _
    $region3: #{forward.1} parent=1 // pred_check_branch
      %9 = sbr.rel (0) target = $region5
    $region4: #{forward.1} parent=1 // pred_region
      _
    $region5: #{forward.1} parent=1 // pred_fallthru
      _
    // Predicated region
    $region6: #{forward.1} parent=1 // pred_check
      _
    $region7: #{forward.1} parent=1 // pred_check_branch
      %11 = sbr.rel (0) target = $region9
    $region8: #{forward.1} parent=1 // pred_region
      %13 = vsyncadd [#allocation3], 0
      %s14 = sshll.u32 %s1, 4
      %s15 = int_to_ptr.hbm [resolvable:$true] %s14
      %s16 = sshll.u32 [#allocation2], 4
      %s17 = int_to_ptr.vmem [resolvable:$true] %s16
      %22 = dma.hbm_to_vmem [thread:$0]  %s15, 16128, %s17, [#allocation3], 128, 128, 8
    $region9: #{forward.1} parent=1 // pred_fallthru
      _
    // Predicated region
    $region10: #{forward.1} parent=1 // pred_check
      _
    $region11: #{forward.1} parent=1 // pred_check_branch
      %24 = sbr.rel (0) target = $region13
    $region12: #{forward.1} parent=1 // pred_region
      %26 = dma.done [#allocation3], 16128
    $region13: #{forward.1} parent=1 // pred_fallthru
      _
    %v27 = vld [vmem:[%s0] sm:$0xff]
    %v28 = vld [vmem:[%s0 + $0x8] sm:$0xff]
    %v29 = vld [vmem:[%s0 + $0x10] sm:$0xff]
    %v30 = vld [vmem:[%s0 + $0x18] sm:$0xff]
    %v31 = vld [vmem:[#allocation2] sm:$0xff]
    %v32 = vld [vmem:[#allocation2 + $0x8] sm:$0xff]
    %v33 = vld [vmem:[#allocation2 + $0x10] sm:$0xff]
    %v34 = vld [vmem:[#allocation2 + $0x18] sm:$0xff]
    %v35 = vld [vmem:[#allocation2 + $0x20] sm:$0xff]
    %v36 = vld [vmem:[#allocation2 + $0x28] sm:$0xff]
    %v37 = vld [vmem:[#allocation2 + $0x98] sm:$0xff]
    %v38 = vld [vmem:[#allocation2 + $0xa0] sm:$0xff]
    %v39 = vld [vmem:[#allocation2 + $0xa8] sm:$0xff]
    %v40 = vld [vmem:[#allocation2 + $0xb0] sm:$0xff]
    %vm41 = vcmask 261120
    %v43 = vsel %vm41, %v37, 0
    %v46 = vsel %vm41, %v38, 0
    %v49 = vsel %vm41, %v39, 0
    %v52 = vsel %vm41, %v40, 0
    %54 = vmatpush.msra.mxu0 0.0
    %55 = vmatpush.msra.mxu0 0.0
    %56 = vmatpush.msra.mxu0 0.0
    %57 = vmatpush.msra.mxu0 0.0
    %58 = vmatpush.msra.mxu0 0.0
    %59 = vmatpush.msra.mxu0 0.0
    %60 = vmatpush.msra.mxu0 0.0
    %61 = vmatpush.msra.mxu0 0.0
    %62 = vmatpush.msra.mxu0 0.0
    %63 = vmatpush.msra.mxu0 0.0
    %64 = vmatpush.msra.mxu0 0.0
    %65 = vmatpush.msra.mxu0 0.0
    %66 = vmatpush.msra.mxu0 %v30
    %67 = vmatpush.msra.mxu0 %v29
    %68 = vmatpush.msra.mxu0 %v28
    %69 = vmatpush.msra.mxu0 %v27
    %70 = vmatmul.f32.gmra.mxu0 %v43
    %v71 = vpop.f32.mrf.mxu0
    %v72 = vadd.f32 0.0, %v71
    %73 = vmatmul.f32.gmra.mxu0 %v46
    %v74 = vpop.f32.mrf.mxu0
    %v75 = vadd.f32 0.0, %v74
    %76 = vmatmul.f32.gmra.mxu0 %v49
    %v77 = vpop.f32.mrf.mxu0
    %v78 = vadd.f32 0.0, %v77
    %79 = vmatmul.f32.gmra.mxu0 %v52
    %v80 = vpop.f32.mrf.mxu0
    %v81 = vadd.f32 0.0, %v80
    %82 = vdwg.mxu0
    %v83 = vld [vmem:[#allocation2 + $0x30] sm:$0xff]
    %v84 = vld [vmem:[#allocation2 + $0x38] sm:$0xff]
    %v85 = vld [vmem:[#allocation2 + $0x40] sm:$0xff]
    %v86 = vld [vmem:[#allocation2 + $0x48] sm:$0xff]
    %v87 = vld [vmem:[#allocation2 + $0x50] sm:$0xff]
    %v88 = vld [vmem:[#allocation2 + $0x58] sm:$0xff]
    %vm89 = vcmask 392192
    %v91 = vsel %vm89, %v27, 0
    %v94 = vsel %vm89, %v28, 0
    %v97 = vsel %vm89, %v29, 0
    %v100 = vsel %vm89, %v30, 0
    %102 = vmatpush.msra.mxu0 0.0
    %103 = vmatpush.msra.mxu0 0.0
    %104 = vmatpush.msra.mxu0 0.0
    %105 = vmatpush.msra.mxu0 0.0
    %106 = vmatpush.msra.mxu0 0.0
    %107 = vmatpush.msra.mxu0 0.0
    %108 = vmatpush.msra.mxu0 0.0
    %109 = vmatpush.msra.mxu0 0.0
    %110 = vmatpush.msra.mxu0 0.0
    %111 = vmatpush.msra.mxu0 0.0
    %112 = vmatpush.msra.mxu0 %v88
    %113 = vmatpush.msra.mxu0 %v87
    %114 = vmatpush.msra.mxu0 %v86
    %115 = vmatpush.msra.mxu0 %v85
    %116 = vmatpush.msra.mxu0 %v84
    %117 = vmatpush.msra.mxu0 %v83
    %118 = vmatmul.f32.gmra.mxu0 %v91
    %v119 = vpop.f32.mrf.mxu0
    %v120 = vadd.f32 0.0, %v119
    %121 = vmatmul.f32.gmra.mxu0 %v94
    %v122 = vpop.f32.mrf.mxu0
    %v123 = vadd.f32 0.0, %v122
    %124 = vmatmul.f32.gmra.mxu0 %v97
    %v125 = vpop.f32.mrf.mxu0
    %v126 = vadd.f32 0.0, %v125
    %127 = vmatmul.f32.gmra.mxu0 %v100
    %v128 = vpop.f32.mrf.mxu0
    %v129 = vadd.f32 0.0, %v128
    %130 = vdwg.mxu0
    %v132 = vsel %vm89, %v72, 0
    %v135 = vsel %vm89, %v75, 0
    %v138 = vsel %vm89, %v78, 0
    %v141 = vsel %vm89, %v81, 0
    %143 = vmatpush.msra.mxu0 0.0
    %144 = vmatpush.msra.mxu0 0.0
    %145 = vmatpush.msra.mxu0 0.0
    %146 = vmatpush.msra.mxu0 0.0
    %147 = vmatpush.msra.mxu0 0.0
    %148 = vmatpush.msra.mxu0 0.0
    %149 = vmatpush.msra.mxu0 0.0
    %150 = vmatpush.msra.mxu0 0.0
    %151 = vmatpush.msra.mxu0 0.0
    %152 = vmatpush.msra.mxu0 0.0
    %153 = vmatpush.msra.mxu0 %v36
    %154 = vmatpush.msra.mxu0 %v35
    %155 = vmatpush.msra.mxu0 %v34
    %156 = vmatpush.msra.mxu0 %v33
    %157 = vmatpush.msra.mxu0 %v32
    %158 = vmatpush.msra.mxu0 %v31
    %159 = vmatmul.f32.gmra.mxu0 %v132
    %v160 = vpop.f32.mrf.mxu0
    %v161 = vadd.f32 %v120, %v160
    %162 = vmatmul.f32.gmra.mxu0 %v135
    %v163 = vpop.f32.mrf.mxu0
    %v164 = vadd.f32 %v123, %v163
    %165 = vmatmul.f32.gmra.mxu0 %v138
    %v166 = vpop.f32.mrf.mxu0
    %v167 = vadd.f32 %v126, %v166
    %168 = vmatmul.f32.gmra.mxu0 %v141
    %v169 = vpop.f32.mrf.mxu0
    %v170 = vadd.f32 %v129, %v169
    %171 = vdwg.mxu0
    %v172 = vld [vmem:[#allocation2 + $0x60] sm:$0xff]
    %v173 = vld [vmem:[#allocation2 + $0x68] sm:$0xff]
    %v174 = vld [vmem:[#allocation2 + $0x70] sm:$0xff]
    %v175 = vld [vmem:[#allocation2 + $0x78] sm:$0xff]
    %v176 = vld [vmem:[#allocation2 + $0x80] sm:$0xff]
    %v177 = vld [vmem:[#allocation2 + $0x88] sm:$0xff]
    %v178 = vld [vmem:[#allocation2 + $0xb8] sm:$0xff]
    %v179 = vld [vmem:[#allocation2 + $0xc0] sm:$0xff]
    %v180 = vld [vmem:[#allocation2 + $0xc8] sm:$0xff]
    %v181 = vld [vmem:[#allocation2 + $0xd0] sm:$0xff]
    %v183 = vsel %vm41, %v178, 0
    %v186 = vsel %vm41, %v179, 0
    %v189 = vsel %vm41, %v180, 0
    %v192 = vsel %vm41, %v181, 0
    %194 = vmatpush.msra.mxu0 0.0
    %195 = vmatpush.msra.mxu0 0.0
    %196 = vmatpush.msra.mxu0 0.0
    %197 = vmatpush.msra.mxu0 0.0
    %198 = vmatpush.msra.mxu0 0.0
    %199 = vmatpush.msra.mxu0 0.0
    %200 = vmatpush.msra.mxu0 0.0
    %201 = vmatpush.msra.mxu0 0.0
    %202 = vmatpush.msra.mxu0 0.0
    %203 = vmatpush.msra.mxu0 0.0
    %204 = vmatpush.msra.mxu0 0.0
    %205 = vmatpush.msra.mxu0 0.0
    %206 = vmatpush.msra.mxu0 %v30
    %207 = vmatpush.msra.mxu0 %v29
    %208 = vmatpush.msra.mxu0 %v28
    %209 = vmatpush.msra.mxu0 %v27
    %210 = vmatmul.f32.gmra.mxu0 %v183
    %v211 = vpop.f32.mrf.mxu0
    %v212 = vadd.f32 0.0, %v211
    %213 = vmatmul.f32.gmra.mxu0 %v186
    %v214 = vpop.f32.mrf.mxu0
    %v215 = vadd.f32 0.0, %v214
    %216 = vmatmul.f32.gmra.mxu0 %v189
    %v217 = vpop.f32.mrf.mxu0
    %v218 = vadd.f32 0.0, %v217
    %219 = vmatmul.f32.gmra.mxu0 %v192
    %v220 = vpop.f32.mrf.mxu0
    %v221 = vadd.f32 0.0, %v220
    %222 = vdwg.mxu0
    %v224 = vsel %vm89, %v212, 0
    %v227 = vsel %vm89, %v215, 0
    %v230 = vsel %vm89, %v218, 0
    %v233 = vsel %vm89, %v221, 0
    %235 = vmatpush.msra.mxu0 0.0
    %236 = vmatpush.msra.mxu0 0.0
    %237 = vmatpush.msra.mxu0 0.0
    %238 = vmatpush.msra.mxu0 0.0
    %239 = vmatpush.msra.mxu0 0.0
    %240 = vmatpush.msra.mxu0 0.0
    %241 = vmatpush.msra.mxu0 0.0
    %242 = vmatpush.msra.mxu0 0.0
    %243 = vmatpush.msra.mxu0 0.0
    %244 = vmatpush.msra.mxu0 0.0
    %245 = vmatpush.msra.mxu0 %v177
    %246 = vmatpush.msra.mxu0 %v176
    %247 = vmatpush.msra.mxu0 %v175
    %248 = vmatpush.msra.mxu0 %v174
    %249 = vmatpush.msra.mxu0 %v173
    %250 = vmatpush.msra.mxu0 %v172
    %251 = vmatmul.f32.gmra.mxu0 %v224
    %v252 = vpop.f32.mrf.mxu0
    %v253 = vadd.f32 0.0, %v252
    %254 = vmatmul.f32.gmra.mxu0 %v227
    %v255 = vpop.f32.mrf.mxu0
    %v256 = vadd.f32 0.0, %v255
    %257 = vmatmul.f32.gmra.mxu0 %v230
    %v258 = vpop.f32.mrf.mxu0
    %v259 = vadd.f32 0.0, %v258
    %260 = vmatmul.f32.gmra.mxu0 %v233
    %v261 = vpop.f32.mrf.mxu0
    %v262 = vadd.f32 0.0, %v261
    %263 = vdwg.mxu0
    %v264 = vadd.f32 %v161, %v253
    %v265 = vadd.f32 %v164, %v256
    %v266 = vadd.f32 %v167, %v259
    %v267 = vadd.f32 %v170, %v262
    %v268 = vld [vmem:[#allocation2 + $0x90] sm:$0x1]
    %v269 = vperm.slane %v268, 0
    %v270 = vadd.f32 %v264, %v269
    %v271 = vadd.f32 %v265, %v269
    %v272 = vadd.f32 %v266, %v269
    %v273 = vadd.f32 %v267, %v269
    %v274 = vmax.f32 %v270, 0.0
    %v275 = vmax.f32 %v271, 0.0
    %v276 = vmax.f32 %v272, 0.0
    %v277 = vmax.f32 %v273, 0.0
    %v278 = vld [vmem:[#allocation2 + $0xf8] sm:$0xff]
    %v279 = vld [vmem:[#allocation2 + $0x100] sm:$0xff]
    %v280 = vld [vmem:[#allocation2 + $0x108] sm:$0xff]
    %v281 = vld [vmem:[#allocation2 + $0x110] sm:$0xff]
    %v282 = vld [vmem:[#allocation2 + $0x118] sm:$0xff]
    %v283 = vld [vmem:[#allocation2 + $0x120] sm:$0xff]
    %v284 = vld [vmem:[#allocation2 + $0x128] sm:$0xff]
    %v285 = vld [vmem:[#allocation2 + $0x130] sm:$0xff]
    %vm286 = vcmask 523264
    %v288 = vsel %vm286, %v274, 0
    %v291 = vsel %vm286, %v275, 0
    %v294 = vsel %vm286, %v276, 0
    %v297 = vsel %vm286, %v277, 0
    %299 = vmatpush.msra.mxu0 0.0
    %300 = vmatpush.msra.mxu0 0.0
    %301 = vmatpush.msra.mxu0 0.0
    %302 = vmatpush.msra.mxu0 0.0
    %303 = vmatpush.msra.mxu0 0.0
    %304 = vmatpush.msra.mxu0 0.0
    %305 = vmatpush.msra.mxu0 0.0
    %306 = vmatpush.msra.mxu0 0.0
    %307 = vmatpush.msra.mxu0 %v285
    %308 = vmatpush.msra.mxu0 %v284
    %309 = vmatpush.msra.mxu0 %v283
    %310 = vmatpush.msra.mxu0 %v282
    %311 = vmatpush.msra.mxu0 %v281
    %312 = vmatpush.msra.mxu0 %v280
    %313 = vmatpush.msra.mxu0 %v279
    %314 = vmatpush.msra.mxu0 %v278
    %315 = vmatmul.f32.gmra.mxu0 %v288
    %v316 = vpop.f32.mrf.mxu0
    %v317 = vadd.f32 0.0, %v316
    %318 = vmatmul.f32.gmra.mxu0 %v291
    %v319 = vpop.f32.mrf.mxu0
    %v320 = vadd.f32 0.0, %v319
    %321 = vmatmul.f32.gmra.mxu0 %v294
    %v322 = vpop.f32.mrf.mxu0
    %v323 = vadd.f32 0.0, %v322
    %324 = vmatmul.f32.gmra.mxu0 %v297
    %v325 = vpop.f32.mrf.mxu0
    %v326 = vadd.f32 0.0, %v325
    %327 = vdwg.mxu0
    %v328 = vmax.f32 %v274, %v317
    %v329 = vmax.f32 %v275, %v320
    %v330 = vmax.f32 %v276, %v323
    %v331 = vmax.f32 %v277, %v326
    %v332 = vld [vmem:[#allocation2 + $0xd8] sm:$0xff]
    %v333 = vld [vmem:[#allocation2 + $0xe0] sm:$0xff]
    %v334 = vld [vmem:[#allocation2 + $0xe8] sm:$0xff]
    %v335 = vld [vmem:[#allocation2 + $0xf0] sm:$0xff]
    %v337 = vsel %vm41, %v332, 0
    %v340 = vsel %vm41, %v333, 0
    %v343 = vsel %vm41, %v334, 0
    %v346 = vsel %vm41, %v335, 0
    %348 = vmatpush.msra.mxu0 0.0
    %349 = vmatpush.msra.mxu0 0.0
    %350 = vmatpush.msra.mxu0 0.0
    %351 = vmatpush.msra.mxu0 0.0
    %352 = vmatpush.msra.mxu0 0.0
    %353 = vmatpush.msra.mxu0 0.0
    %354 = vmatpush.msra.mxu0 0.0
    %355 = vmatpush.msra.mxu0 0.0
    %356 = vmatpush.msra.mxu0 0.0
    %357 = vmatpush.msra.mxu0 0.0
    %358 = vmatpush.msra.mxu0 0.0
    %359 = vmatpush.msra.mxu0 0.0
    %360 = vmatpush.msra.mxu0 %v331
    %361 = vmatpush.msra.mxu0 %v330
    %362 = vmatpush.msra.mxu0 %v329
    %363 = vmatpush.msra.mxu0 %v328
    %364 = vmatmul.f32.gmra.mxu0 %v337
    %v365 = vpop.f32.mrf.mxu0
    %v366 = vadd.f32 0.0, %v365
    %367 = vmatmul.f32.gmra.mxu0 %v340
    %v368 = vpop.f32.mrf.mxu0
    %v369 = vadd.f32 0.0, %v368
    %370 = vmatmul.f32.gmra.mxu0 %v343
    %v371 = vpop.f32.mrf.mxu0
    %v372 = vadd.f32 0.0, %v371
    %373 = vmatmul.f32.gmra.mxu0 %v346
    %v374 = vpop.f32.mrf.mxu0
    %v375 = vadd.f32 0.0, %v374
    %376 = vdwg.mxu0
    %v377 = vmax.f32 %v328, %v366
    %v378 = vmax.f32 %v329, %v369
    %v379 = vmax.f32 %v330, %v372
    %v380 = vmax.f32 %v331, %v375
    %v381 = vld [vmem:[#allocation2 + $0x138] sm:$0xff]
    %v382 = vld [vmem:[#allocation2 + $0x140] sm:$0xff]
    %v383 = vld [vmem:[#allocation2 + $0x148] sm:$0xff]
    %v384 = vld [vmem:[#allocation2 + $0x150] sm:$0xff]
    %v385 = vld [vmem:[#allocation2 + $0x158] sm:$0xff]
    %v386 = vld [vmem:[#allocation2 + $0x160] sm:$0xff]
    %v387 = vld [vmem:[#allocation2 + $0x168] sm:$0xff]
    %v388 = vld [vmem:[#allocation2 + $0x170] sm:$0xff]
    %v389 = vld [vmem:[#allocation2 + $0x200] sm:$0xff]
    %v390 = vld [vmem:[#allocation2 + $0x208] sm:$0xff]
    %v391 = vld [vmem:[#allocation2 + $0x210] sm:$0xff]
    %v392 = vld [vmem:[#allocation2 + $0x218] sm:$0xff]
    %v394 = vsel %vm41, %v389, 0
    %v397 = vsel %vm41, %v390, 0
    %v400 = vsel %vm41, %v391, 0
    %v403 = vsel %vm41, %v392, 0
    %405 = vmatpush.msra.mxu0 0.0
    %406 = vmatpush.msra.mxu0 0.0
    %407 = vmatpush.msra.mxu0 0.0
    %408 = vmatpush.msra.mxu0 0.0
    %409 = vmatpush.msra.mxu0 0.0
    %410 = vmatpush.msra.mxu0 0.0
    %411 = vmatpush.msra.mxu0 0.0
    %412 = vmatpush.msra.mxu0 0.0
    %413 = vmatpush.msra.mxu0 0.0
    %414 = vmatpush.msra.mxu0 0.0
    %415 = vmatpush.msra.mxu0 0.0
    %416 = vmatpush.msra.mxu0 0.0
    %417 = vmatpush.msra.mxu0 %v380
    %418 = vmatpush.msra.mxu0 %v379
    %419 = vmatpush.msra.mxu0 %v378
    %420 = vmatpush.msra.mxu0 %v377
    %421 = vmatmul.f32.gmra.mxu0 %v394
    %v422 = vpop.f32.mrf.mxu0
    %v423 = vadd.f32 0.0, %v422
    %424 = vmatmul.f32.gmra.mxu0 %v397
    %v425 = vpop.f32.mrf.mxu0
    %v426 = vadd.f32 0.0, %v425
    %427 = vmatmul.f32.gmra.mxu0 %v400
    %v428 = vpop.f32.mrf.mxu0
    %v429 = vadd.f32 0.0, %v428
    %430 = vmatmul.f32.gmra.mxu0 %v403
    %v431 = vpop.f32.mrf.mxu0
    %v432 = vadd.f32 0.0, %v431
    %433 = vdwg.mxu0
    %v434 = vld [vmem:[#allocation2 + $0x178] sm:$0xff]
    %v435 = vld [vmem:[#allocation2 + $0x180] sm:$0xff]
    %v436 = vld [vmem:[#allocation2 + $0x188] sm:$0xff]
    %v437 = vld [vmem:[#allocation2 + $0x190] sm:$0xff]
    %v438 = vld [vmem:[#allocation2 + $0x198] sm:$0xff]
    %v439 = vld [vmem:[#allocation2 + $0x1a0] sm:$0xff]
    %v440 = vld [vmem:[#allocation2 + $0x1a8] sm:$0xff]
    %v441 = vld [vmem:[#allocation2 + $0x1b0] sm:$0xff]
    %v443 = vsel %vm286, %v377, 0
    %v446 = vsel %vm286, %v378, 0
    %v449 = vsel %vm286, %v379, 0
    %v452 = vsel %vm286, %v380, 0
    %454 = vmatpush.msra.mxu0 0.0
    %455 = vmatpush.msra.mxu0 0.0
    %456 = vmatpush.msra.mxu0 0.0
    %457 = vmatpush.msra.mxu0 0.0
    %458 = vmatpush.msra.mxu0 0.0
    %459 = vmatpush.msra.mxu0 0.0
    %460 = vmatpush.msra.mxu0 0.0
    %461 = vmatpush.msra.mxu0 0.0
    %462 = vmatpush.msra.mxu0 %v441
    %463 = vmatpush.msra.mxu0 %v440
    %464 = vmatpush.msra.mxu0 %v439
    %465 = vmatpush.msra.mxu0 %v438
    %466 = vmatpush.msra.mxu0 %v437
    %467 = vmatpush.msra.mxu0 %v436
    %468 = vmatpush.msra.mxu0 %v435
    %469 = vmatpush.msra.mxu0 %v434
    %470 = vmatmul.f32.gmra.mxu0 %v443
    %v471 = vpop.f32.mrf.mxu0
    %v472 = vadd.f32 0.0, %v471
    %473 = vmatmul.f32.gmra.mxu0 %v446
    %v474 = vpop.f32.mrf.mxu0
    %v475 = vadd.f32 0.0, %v474
    %476 = vmatmul.f32.gmra.mxu0 %v449
    %v477 = vpop.f32.mrf.mxu0
    %v478 = vadd.f32 0.0, %v477
    %479 = vmatmul.f32.gmra.mxu0 %v452
    %v480 = vpop.f32.mrf.mxu0
    %v481 = vadd.f32 0.0, %v480
    %482 = vdwg.mxu0
    %v484 = vsel %vm286, %v423, 0
    %v487 = vsel %vm286, %v426, 0
    %v490 = vsel %vm286, %v429, 0
    %v493 = vsel %vm286, %v432, 0
    %495 = vmatpush.msra.mxu0 0.0
    %496 = vmatpush.msra.mxu0 0.0
    %497 = vmatpush.msra.mxu0 0.0
    %498 = vmatpush.msra.mxu0 0.0
    %499 = vmatpush.msra.mxu0 0.0
    %500 = vmatpush.msra.mxu0 0.0
    %501 = vmatpush.msra.mxu0 0.0
    %502 = vmatpush.msra.mxu0 0.0
    %503 = vmatpush.msra.mxu0 %v388
    %504 = vmatpush.msra.mxu0 %v387
    %505 = vmatpush.msra.mxu0 %v386
    %506 = vmatpush.msra.mxu0 %v385
    %507 = vmatpush.msra.mxu0 %v384
    %508 = vmatpush.msra.mxu0 %v383
    %509 = vmatpush.msra.mxu0 %v382
    %510 = vmatpush.msra.mxu0 %v381
    %511 = vmatmul.f32.gmra.mxu0 %v484
    %v512 = vpop.f32.mrf.mxu0
    %v513 = vadd.f32 %v472, %v512
    %514 = vmatmul.f32.gmra.mxu0 %v487
    %v515 = vpop.f32.mrf.mxu0
    %v516 = vadd.f32 %v475, %v515
    %517 = vmatmul.f32.gmra.mxu0 %v490
    %v518 = vpop.f32.mrf.mxu0
    %v519 = vadd.f32 %v478, %v518
    %520 = vmatmul.f32.gmra.mxu0 %v493
    %v521 = vpop.f32.mrf.mxu0
    %v522 = vadd.f32 %v481, %v521
    %523 = vdwg.mxu0
    %v524 = vld [vmem:[#allocation2 + $0x1b8] sm:$0xff]
    %v525 = vld [vmem:[#allocation2 + $0x1c0] sm:$0xff]
    %v526 = vld [vmem:[#allocation2 + $0x1c8] sm:$0xff]
    %v527 = vld [vmem:[#allocation2 + $0x1d0] sm:$0xff]
    %v528 = vld [vmem:[#allocation2 + $0x1d8] sm:$0xff]
    %v529 = vld [vmem:[#allocation2 + $0x1e0] sm:$0xff]
    %v530 = vld [vmem:[#allocation2 + $0x1e8] sm:$0xff]
    %v531 = vld [vmem:[#allocation2 + $0x1f0] sm:$0xff]
    %v532 = vld [vmem:[#allocation2 + $0x220] sm:$0xff]
    %v533 = vld [vmem:[#allocation2 + $0x228] sm:$0xff]
    %v534 = vld [vmem:[#allocation2 + $0x230] sm:$0xff]
    %v535 = vld [vmem:[#allocation2 + $0x238] sm:$0xff]
    %v537 = vsel %vm41, %v532, 0
    %v540 = vsel %vm41, %v533, 0
    %v543 = vsel %vm41, %v534, 0
    %v546 = vsel %vm41, %v535, 0
    %548 = vmatpush.msra.mxu0 0.0
    %549 = vmatpush.msra.mxu0 0.0
    %550 = vmatpush.msra.mxu0 0.0
    %551 = vmatpush.msra.mxu0 0.0
    %552 = vmatpush.msra.mxu0 0.0
    %553 = vmatpush.msra.mxu0 0.0
    %554 = vmatpush.msra.mxu0 0.0
    %555 = vmatpush.msra.mxu0 0.0
    %556 = vmatpush.msra.mxu0 0.0
    %557 = vmatpush.msra.mxu0 0.0
    %558 = vmatpush.msra.mxu0 0.0
    %559 = vmatpush.msra.mxu0 0.0
    %560 = vmatpush.msra.mxu0 %v380
    %561 = vmatpush.msra.mxu0 %v379
    %562 = vmatpush.msra.mxu0 %v378
    %563 = vmatpush.msra.mxu0 %v377
    %564 = vmatmul.f32.gmra.mxu0 %v537
    %v565 = vpop.f32.mrf.mxu0
    %v566 = vadd.f32 0.0, %v565
    %567 = vmatmul.f32.gmra.mxu0 %v540
    %v568 = vpop.f32.mrf.mxu0
    %v569 = vadd.f32 0.0, %v568
    %570 = vmatmul.f32.gmra.mxu0 %v543
    %v571 = vpop.f32.mrf.mxu0
    %v572 = vadd.f32 0.0, %v571
    %573 = vmatmul.f32.gmra.mxu0 %v546
    %v574 = vpop.f32.mrf.mxu0
    %v575 = vadd.f32 0.0, %v574
    %576 = vdwg.mxu0
    %v578 = vsel %vm286, %v566, 0
    %v581 = vsel %vm286, %v569, 0
    %v584 = vsel %vm286, %v572, 0
    %v587 = vsel %vm286, %v575, 0
    %589 = vmatpush.msra.mxu0 0.0
    %590 = vmatpush.msra.mxu0 0.0
    %591 = vmatpush.msra.mxu0 0.0
    %592 = vmatpush.msra.mxu0 0.0
    %593 = vmatpush.msra.mxu0 0.0
    %594 = vmatpush.msra.mxu0 0.0
    %595 = vmatpush.msra.mxu0 0.0
    %596 = vmatpush.msra.mxu0 0.0
    %597 = vmatpush.msra.mxu0 %v531
    %598 = vmatpush.msra.mxu0 %v530
    %599 = vmatpush.msra.mxu0 %v529
    %600 = vmatpush.msra.mxu0 %v528
    %601 = vmatpush.msra.mxu0 %v527
    %602 = vmatpush.msra.mxu0 %v526
    %603 = vmatpush.msra.mxu0 %v525
    %604 = vmatpush.msra.mxu0 %v524
    %605 = vmatmul.f32.gmra.mxu0 %v578
    %v606 = vpop.f32.mrf.mxu0
    %v607 = vadd.f32 0.0, %v606
    %608 = vmatmul.f32.gmra.mxu0 %v581
    %v609 = vpop.f32.mrf.mxu0
    %v610 = vadd.f32 0.0, %v609
    %611 = vmatmul.f32.gmra.mxu0 %v584
    %v612 = vpop.f32.mrf.mxu0
    %v613 = vadd.f32 0.0, %v612
    %614 = vmatmul.f32.gmra.mxu0 %v587
    %v615 = vpop.f32.mrf.mxu0
    %v616 = vadd.f32 0.0, %v615
    %617 = vdwg.mxu0
    %v618 = vadd.f32 %v513, %v607
    %v619 = vadd.f32 %v516, %v610
    %v620 = vadd.f32 %v519, %v613
    %v621 = vadd.f32 %v522, %v616
    %v622 = vld [vmem:[#allocation2 + $0x1f8] sm:$0x1]
    %v623 = vperm.slane %v622, 0
    %v624 = vadd.f32 %v618, %v623
    %v625 = vadd.f32 %v619, %v623
    %v626 = vadd.f32 %v620, %v623
    %v627 = vadd.f32 %v621, %v623
    %v628 = vmax.f32 %v624, 0.0
    %v629 = vmax.f32 %v625, 0.0
    %v630 = vmax.f32 %v626, 0.0
    %v631 = vmax.f32 %v627, 0.0
    %v632 = vld [vmem:[#allocation2 + $0x260] sm:$0xff]
    %v633 = vld [vmem:[#allocation2 + $0x268] sm:$0xff]
    %v634 = vld [vmem:[#allocation2 + $0x270] sm:$0xff]
    %v635 = vld [vmem:[#allocation2 + $0x278] sm:$0xff]
    %v636 = vld [vmem:[#allocation2 + $0x280] sm:$0xff]
    %v637 = vld [vmem:[#allocation2 + $0x288] sm:$0xff]
    %v638 = vld [vmem:[#allocation2 + $0x290] sm:$0xff]
    %v639 = vld [vmem:[#allocation2 + $0x298] sm:$0xff]
    %v641 = vsel %vm286, %v628, 0
    %v644 = vsel %vm286, %v629, 0
    %v647 = vsel %vm286, %v630, 0
    %v650 = vsel %vm286, %v631, 0
    %652 = vmatpush.msra.mxu0 0.0
    %653 = vmatpush.msra.mxu0 0.0
    %654 = vmatpush.msra.mxu0 0.0
    %655 = vmatpush.msra.mxu0 0.0
    %656 = vmatpush.msra.mxu0 0.0
    %657 = vmatpush.msra.mxu0 0.0
    %658 = vmatpush.msra.mxu0 0.0
    %659 = vmatpush.msra.mxu0 0.0
    %660 = vmatpush.msra.mxu0 %v639
    %661 = vmatpush.msra.mxu0 %v638
    %662 = vmatpush.msra.mxu0 %v637
    %663 = vmatpush.msra.mxu0 %v636
    %664 = vmatpush.msra.mxu0 %v635
    %665 = vmatpush.msra.mxu0 %v634
    %666 = vmatpush.msra.mxu0 %v633
    %667 = vmatpush.msra.mxu0 %v632
    %668 = vmatmul.f32.gmra.mxu0 %v641
    %v669 = vpop.f32.mrf.mxu0
    %v670 = vadd.f32 0.0, %v669
    %671 = vmatmul.f32.gmra.mxu0 %v644
    %v672 = vpop.f32.mrf.mxu0
    %v673 = vadd.f32 0.0, %v672
    %674 = vmatmul.f32.gmra.mxu0 %v647
    %v675 = vpop.f32.mrf.mxu0
    %v676 = vadd.f32 0.0, %v675
    %677 = vmatmul.f32.gmra.mxu0 %v650
    %v678 = vpop.f32.mrf.mxu0
    %v679 = vadd.f32 0.0, %v678
    %680 = vdwg.mxu0
    %v681 = vmax.f32 %v628, %v670
    %v682 = vmax.f32 %v629, %v673
    %v683 = vmax.f32 %v630, %v676
    %v684 = vmax.f32 %v631, %v679
    %v685 = vld [vmem:[#allocation2 + $0x240] sm:$0xff]
    %v686 = vld [vmem:[#allocation2 + $0x248] sm:$0xff]
    %v687 = vld [vmem:[#allocation2 + $0x250] sm:$0xff]
    %v688 = vld [vmem:[#allocation2 + $0x258] sm:$0xff]
    %v690 = vsel %vm41, %v685, 0
    %v693 = vsel %vm41, %v686, 0
    %v696 = vsel %vm41, %v687, 0
    %v699 = vsel %vm41, %v688, 0
    %701 = vmatpush.msra.mxu0 0.0
    %702 = vmatpush.msra.mxu0 0.0
    %703 = vmatpush.msra.mxu0 0.0
    %704 = vmatpush.msra.mxu0 0.0
    %705 = vmatpush.msra.mxu0 0.0
    %706 = vmatpush.msra.mxu0 0.0
    %707 = vmatpush.msra.mxu0 0.0
    %708 = vmatpush.msra.mxu0 0.0
    %709 = vmatpush.msra.mxu0 0.0
    %710 = vmatpush.msra.mxu0 0.0
    %711 = vmatpush.msra.mxu0 0.0
    %712 = vmatpush.msra.mxu0 0.0
    %713 = vmatpush.msra.mxu0 %v684
    %714 = vmatpush.msra.mxu0 %v683
    %715 = vmatpush.msra.mxu0 %v682
    %716 = vmatpush.msra.mxu0 %v681
    %717 = vmatmul.f32.gmra.mxu0 %v690
    %v718 = vpop.f32.mrf.mxu0
    %v719 = vadd.f32 0.0, %v718
    %720 = vmatmul.f32.gmra.mxu0 %v693
    %v721 = vpop.f32.mrf.mxu0
    %v722 = vadd.f32 0.0, %v721
    %723 = vmatmul.f32.gmra.mxu0 %v696
    %v724 = vpop.f32.mrf.mxu0
    %v725 = vadd.f32 0.0, %v724
    %726 = vmatmul.f32.gmra.mxu0 %v699
    %v727 = vpop.f32.mrf.mxu0
    %v728 = vadd.f32 0.0, %v727
    %729 = vdwg.mxu0
    %v730 = vmax.f32 %v681, %v719
    %v731 = vmax.f32 %v682, %v722
    %v732 = vmax.f32 %v683, %v725
    %v733 = vmax.f32 %v684, %v728
    %v734 = vld [vmem:[#allocation2 + $0x3d0] sm:$0xff]
    %v736 = vsel %vm41, %v734, 0
    %738 = vmatpush.msra.mxu0 0.0
    %739 = vmatpush.msra.mxu0 0.0
    %740 = vmatpush.msra.mxu0 0.0
    %741 = vmatpush.msra.mxu0 0.0
    %742 = vmatpush.msra.mxu0 0.0
    %743 = vmatpush.msra.mxu0 0.0
    %744 = vmatpush.msra.mxu0 0.0
    %745 = vmatpush.msra.mxu0 0.0
    %746 = vmatpush.msra.mxu0 0.0
    %747 = vmatpush.msra.mxu0 0.0
    %748 = vmatpush.msra.mxu0 0.0
    %749 = vmatpush.msra.mxu0 0.0
    %750 = vmatpush.msra.mxu0 %v733
    %751 = vmatpush.msra.mxu0 %v732
    %752 = vmatpush.msra.mxu0 %v731
    %753 = vmatpush.msra.mxu0 %v730
    %754 = vmatmul.f32.gmra.mxu0 %v736
    %v755 = vpop.f32.mrf.mxu0
    %v756 = vadd.f32 0.0, %v755
    %757 = vdwg.mxu0
    %v758 = vld [vmem:[#allocation2 + $0x2a0] sm:$0xff]
    %v759 = vld [vmem:[#allocation2 + $0x2a8] sm:$0xff]
    %v760 = vld [vmem:[#allocation2 + $0x2b0] sm:$0xff]
    %v761 = vld [vmem:[#allocation2 + $0x2b8] sm:$0xff]
    %v762 = vld [vmem:[#allocation2 + $0x2c0] sm:$0xff]
    %v763 = vld [vmem:[#allocation2 + $0x2c8] sm:$0xff]
    %v764 = vld [vmem:[#allocation2 + $0x2d0] sm:$0xff]
    %v765 = vld [vmem:[#allocation2 + $0x2d8] sm:$0xff]
    %v766 = vld [vmem:[#allocation2 + $0x3d8] sm:$0xff]
    %v768 = vsel %vm41, %v766, 0
    %770 = vmatpush.msra.mxu0 0.0
    %771 = vmatpush.msra.mxu0 0.0
    %772 = vmatpush.msra.mxu0 0.0
    %773 = vmatpush.msra.mxu0 0.0
    %774 = vmatpush.msra.mxu0 0.0
    %775 = vmatpush.msra.mxu0 0.0
    %776 = vmatpush.msra.mxu0 0.0
    %777 = vmatpush.msra.mxu0 0.0
    %778 = vmatpush.msra.mxu0 0.0
    %779 = vmatpush.msra.mxu0 0.0
    %780 = vmatpush.msra.mxu0 0.0
    %781 = vmatpush.msra.mxu0 0.0
    %782 = vmatpush.msra.mxu0 %v733
    %783 = vmatpush.msra.mxu0 %v732
    %784 = vmatpush.msra.mxu0 %v731
    %785 = vmatpush.msra.mxu0 %v730
    %786 = vmatmul.f32.gmra.mxu0 %v768
    %v787 = vpop.f32.mrf.mxu0
    %v788 = vadd.f32 0.0, %v787
    %789 = vdwg.mxu0
    %v790 = vld [vmem:[#allocation2 + $0x2e0] sm:$0xff]
    %v791 = vld [vmem:[#allocation2 + $0x2e8] sm:$0xff]
    %v792 = vld [vmem:[#allocation2 + $0x2f0] sm:$0xff]
    %v793 = vld [vmem:[#allocation2 + $0x2f8] sm:$0xff]
    %v794 = vld [vmem:[#allocation2 + $0x300] sm:$0xff]
    %v795 = vld [vmem:[#allocation2 + $0x308] sm:$0xff]
    %v796 = vld [vmem:[#allocation2 + $0x310] sm:$0xff]
    %v797 = vld [vmem:[#allocation2 + $0x318] sm:$0xff]
    %v799 = vsel %vm286, %v788, 0
    %801 = vmatpush.msra.mxu0 0.0
    %802 = vmatpush.msra.mxu0 0.0
    %803 = vmatpush.msra.mxu0 0.0
    %804 = vmatpush.msra.mxu0 0.0
    %805 = vmatpush.msra.mxu0 0.0
    %806 = vmatpush.msra.mxu0 0.0
    %807 = vmatpush.msra.mxu0 0.0
    %808 = vmatpush.msra.mxu0 0.0
    %809 = vmatpush.msra.mxu0 %v797
    %810 = vmatpush.msra.mxu0 %v796
    %811 = vmatpush.msra.mxu0 %v795
    %812 = vmatpush.msra.mxu0 %v794
    %813 = vmatpush.msra.mxu0 %v793
    %814 = vmatpush.msra.mxu0 %v792
    %815 = vmatpush.msra.mxu0 %v791
    %816 = vmatpush.msra.mxu0 %v790
    %817 = vmatmul.f32.gmra.mxu0 %v799
    %v818 = vpop.f32.mrf.mxu0
    %v819 = vadd.f32 0.0, %v818
    %820 = vdwg.mxu0
    %v822 = vsel %vm286, %v756, 0
    %824 = vmatpush.msra.mxu0 0.0
    %825 = vmatpush.msra.mxu0 0.0
    %826 = vmatpush.msra.mxu0 0.0
    %827 = vmatpush.msra.mxu0 0.0
    %828 = vmatpush.msra.mxu0 0.0
    %829 = vmatpush.msra.mxu0 0.0
    %830 = vmatpush.msra.mxu0 0.0
    %831 = vmatpush.msra.mxu0 0.0
    %832 = vmatpush.msra.mxu0 %v765
    %833 = vmatpush.msra.mxu0 %v764
    %834 = vmatpush.msra.mxu0 %v763
    %835 = vmatpush.msra.mxu0 %v762
    %836 = vmatpush.msra.mxu0 %v761
    %837 = vmatpush.msra.mxu0 %v760
    %838 = vmatpush.msra.mxu0 %v759
    %839 = vmatpush.msra.mxu0 %v758
    %840 = vmatmul.f32.gmra.mxu0 %v822
    %v841 = vpop.f32.mrf.mxu0
    %v842 = vadd.f32 %v819, %v841
    %843 = vdwg.mxu0
    %v844 = vld [vmem:[#allocation2 + $0x3e0] sm:$0xff]
    %v846 = vsel %vm41, %v844, 0
    %848 = vmatpush.msra.mxu0 0.0
    %849 = vmatpush.msra.mxu0 0.0
    %850 = vmatpush.msra.mxu0 0.0
    %851 = vmatpush.msra.mxu0 0.0
    %852 = vmatpush.msra.mxu0 0.0
    %853 = vmatpush.msra.mxu0 0.0
    %854 = vmatpush.msra.mxu0 0.0
    %855 = vmatpush.msra.mxu0 0.0
    %856 = vmatpush.msra.mxu0 0.0
    %857 = vmatpush.msra.mxu0 0.0
    %858 = vmatpush.msra.mxu0 0.0
    %859 = vmatpush.msra.mxu0 0.0
    %860 = vmatpush.msra.mxu0 %v733
    %861 = vmatpush.msra.mxu0 %v732
    %862 = vmatpush.msra.mxu0 %v731
    %863 = vmatpush.msra.mxu0 %v730
    %864 = vmatmul.f32.gmra.mxu0 %v846
    %v865 = vpop.f32.mrf.mxu0
    %v866 = vadd.f32 0.0, %v865
    %867 = vdwg.mxu0
    %v868 = vld [vmem:[#allocation2 + $0x320] sm:$0xff]
    %v869 = vld [vmem:[#allocation2 + $0x328] sm:$0xff]
    %v870 = vld [vmem:[#allocation2 + $0x330] sm:$0xff]
    %v871 = vld [vmem:[#allocation2 + $0x338] sm:$0xff]
    %v872 = vld [vmem:[#allocation2 + $0x340] sm:$0xff]
    %v873 = vld [vmem:[#allocation2 + $0x348] sm:$0xff]
    %v874 = vld [vmem:[#allocation2 + $0x350] sm:$0xff]
    %v875 = vld [vmem:[#allocation2 + $0x358] sm:$0xff]
    %v877 = vsel %vm286, %v866, 0
    %879 = vmatpush.msra.mxu0 0.0
    %880 = vmatpush.msra.mxu0 0.0
    %881 = vmatpush.msra.mxu0 0.0
    %882 = vmatpush.msra.mxu0 0.0
    %883 = vmatpush.msra.mxu0 0.0
    %884 = vmatpush.msra.mxu0 0.0
    %885 = vmatpush.msra.mxu0 0.0
    %886 = vmatpush.msra.mxu0 0.0
    %887 = vmatpush.msra.mxu0 %v875
    %888 = vmatpush.msra.mxu0 %v874
    %889 = vmatpush.msra.mxu0 %v873
    %890 = vmatpush.msra.mxu0 %v872
    %891 = vmatpush.msra.mxu0 %v871
    %892 = vmatpush.msra.mxu0 %v870
    %893 = vmatpush.msra.mxu0 %v869
    %894 = vmatpush.msra.mxu0 %v868
    %895 = vmatmul.f32.gmra.mxu0 %v877
    %v896 = vpop.f32.mrf.mxu0
    %v897 = vadd.f32 0.0, %v896
    %898 = vdwg.mxu0
    %v899 = vadd.f32 %v842, %v897
    %v900 = vld [vmem:[#allocation2 + $0x3e8] sm:$0xff]
    %v902 = vsel %vm41, %v900, 0
    %904 = vmatpush.msra.mxu0 0.0
    %905 = vmatpush.msra.mxu0 0.0
    %906 = vmatpush.msra.mxu0 0.0
    %907 = vmatpush.msra.mxu0 0.0
    %908 = vmatpush.msra.mxu0 0.0
    %909 = vmatpush.msra.mxu0 0.0
    %910 = vmatpush.msra.mxu0 0.0
    %911 = vmatpush.msra.mxu0 0.0
    %912 = vmatpush.msra.mxu0 0.0
    %913 = vmatpush.msra.mxu0 0.0
    %914 = vmatpush.msra.mxu0 0.0
    %915 = vmatpush.msra.mxu0 0.0
    %916 = vmatpush.msra.mxu0 %v733
    %917 = vmatpush.msra.mxu0 %v732
    %918 = vmatpush.msra.mxu0 %v731
    %919 = vmatpush.msra.mxu0 %v730
    %920 = vmatmul.f32.gmra.mxu0 %v902
    %v921 = vpop.f32.mrf.mxu0
    %v922 = vadd.f32 0.0, %v921
    %923 = vdwg.mxu0
    %v924 = vld [vmem:[#allocation2 + $0x360] sm:$0xff]
    %v925 = vld [vmem:[#allocation2 + $0x368] sm:$0xff]
    %v926 = vld [vmem:[#allocation2 + $0x370] sm:$0xff]
    %v927 = vld [vmem:[#allocation2 + $0x378] sm:$0xff]
    %v928 = vld [vmem:[#allocation2 + $0x380] sm:$0xff]
    %v929 = vld [vmem:[#allocation2 + $0x388] sm:$0xff]
    %v930 = vld [vmem:[#allocation2 + $0x390] sm:$0xff]
    %v931 = vld [vmem:[#allocation2 + $0x398] sm:$0xff]
    %v933 = vsel %vm286, %v922, 0
    %935 = vmatpush.msra.mxu0 0.0
    %936 = vmatpush.msra.mxu0 0.0
    %937 = vmatpush.msra.mxu0 0.0
    %938 = vmatpush.msra.mxu0 0.0
    %939 = vmatpush.msra.mxu0 0.0
    %940 = vmatpush.msra.mxu0 0.0
    %941 = vmatpush.msra.mxu0 0.0
    %942 = vmatpush.msra.mxu0 0.0
    %943 = vmatpush.msra.mxu0 %v931
    %944 = vmatpush.msra.mxu0 %v930
    %945 = vmatpush.msra.mxu0 %v929
    %946 = vmatpush.msra.mxu0 %v928
    %947 = vmatpush.msra.mxu0 %v927
    %948 = vmatpush.msra.mxu0 %v926
    %949 = vmatpush.msra.mxu0 %v925
    %950 = vmatpush.msra.mxu0 %v924
    %951 = vmatmul.f32.gmra.mxu0 %v933
    %v952 = vpop.f32.mrf.mxu0
    %v953 = vadd.f32 0.0, %v952
    %954 = vdwg.mxu0
    %v955 = vadd.f32 %v899, %v953
    %v956 = vld [vmem:[#allocation2 + $0x3a0] sm:$0x1]
    %v957 = vperm.slane %v956, 0
    %v958 = vadd.f32 %v955, %v957
    %v959 = vmax.f32 %v958, 0.0
    %v960 = vld [vmem:[#allocation2 + $0x3a8] sm:$0xff]
    %v961 = vld [vmem:[#allocation2 + $0x3b0] sm:$0xff]
    %v962 = vld [vmem:[#allocation2 + $0x3b8] sm:$0xff]
    %v963 = vld [vmem:[#allocation2 + $0x3c0] sm:$0xff]
    %v964 = vld [vmem:[#allocation2 + $0x3c8] sm:$0x1]
    %v965 = vperm.slane %v964, 0
    %v967 = vsel %vm41, %v959, 0
    %969 = vmatpush.msra.mxu0 0.0
    %970 = vmatpush.msra.mxu0 0.0
    %971 = vmatpush.msra.mxu0 0.0
    %972 = vmatpush.msra.mxu0 0.0
    %973 = vmatpush.msra.mxu0 0.0
    %974 = vmatpush.msra.mxu0 0.0
    %975 = vmatpush.msra.mxu0 0.0
    %976 = vmatpush.msra.mxu0 0.0
    %977 = vmatpush.msra.mxu0 0.0
    %978 = vmatpush.msra.mxu0 0.0
    %979 = vmatpush.msra.mxu0 0.0
    %980 = vmatpush.msra.mxu0 0.0
    %981 = vmatpush.msra.mxu0 %v963
    %982 = vmatpush.msra.mxu0 %v962
    %983 = vmatpush.msra.mxu0 %v961
    %984 = vmatpush.msra.mxu0 %v960
    %985 = vmatmul.f32.gmra.mxu0 %v967
    %v986 = vpop.f32.mrf.mxu0
    %v987 = vadd.f32 %v965, %v986
    %988 = vdwg.mxu0
    %989 = vst [vmem:[%s2] sm:$0xff] %v987
    // Predicated region
    $region14: #{forward.1} parent=1 // pred_check
      _
    $region15: #{forward.1} parent=1 // pred_check_branch
      %991 = sbr.rel (0) target = $region17
    $region16: #{forward.1} parent=1 // pred_region
      _
    $region17: #{forward.1} parent=1 // pred_fallthru
      _
    // Predicated region
    $region18: #{forward.1} parent=1 // pred_check
      _
    $region19: #{forward.1} parent=1 // pred_check_branch
      %993 = sbr.rel (0) target = $region21
    $region20: #{forward.1} parent=1 // pred_region
      _
    $region21: #{forward.1} parent=1 // pred_fallthru
      _
    %994 = vsyncpa [#allocation3], 1

</llo_original>
